<compile_context>
chip_gen: v7x
topology: tpu7x:2x2x1
jax: 0.10.0
libtpu: 0.0.40
codegen_flags: <defaults>
</compile_context>

<pallas_src>
import functools

import jax
import jax.numpy as jnp
from jax import lax
from jax.experimental import pallas as pl
from jax.experimental.pallas import tpu as pltpu

BN_EPS = 1e-5
LN_EPS = 1e-5
NEG_SLOPE = 0.01          # nn.LeakyReLU default
LANE = 128


def _round_up(x, m):
    return ((x + m - 1) // m) * m


def _vmem_capacity_bytes():
    try:
        return int(pltpu.get_tpu_info().vmem_capacity_bytes)
    except Exception:
        return 128 * 1024 * 1024


def _vmem_limit_bytes():
    # Leave headroom for Pallas-internal scratch / double buffers:
    # ~48 MiB on v7x (64 MiB physical per TC), ~96 MiB on v5e/v6e (128 MiB).
    cap = _vmem_capacity_bytes()
    return min((cap * 3) // 4, 100 * 1024 * 1024)


def _norm_act(y, n_real):
    """BatchNorm1d (train mode, gamma=1, beta=0) -> LayerNorm (no affine) ->
    LeakyReLU(0.01).  `y` is (B, Fp) f32 whose padded columns (>= n_real) are
    exactly zero on entry; LN statistics use only the real columns."""
    fp = y.shape[-1]

    # --- BatchNorm1d over the batch axis (biased variance, eps=1e-5) ---
    bmean = jnp.mean(y, axis=0, keepdims=True)
    db = y - bmean
    bvar = jnp.mean(db * db, axis=0, keepdims=True)
    y = db * lax.rsqrt(bvar + BN_EPS)            # padded cols stay exactly 0

    # --- LayerNorm over the real feature columns only ---
    inv_n = 1.0 / float(n_real)
    lmean = jnp.sum(y, axis=-1, keepdims=True) * inv_n   # padded cols add 0
    dl = y - lmean
    if fp != n_real:
        col = lax.broadcasted_iota(jnp.int32, (1, fp), 1)
        dl = jnp.where(col < n_real, dl, 0.0)            # exclude padded cols
    lvar = jnp.sum(dl * dl, axis=-1, keepdims=True) * inv_n
    y = dl * lax.rsqrt(lvar + LN_EPS)

    # --- LeakyReLU(0.01) ---
    return jnp.where(y >= 0, y, NEG_SLOPE * y)


# --------------------------------------------------------------------------
# Kernel 1: layer-1 linear, K-tiled over the gene axis, N-tiled over h1.
#   grid = (nn, nk), dimension_semantics = ("parallel", "arbitrary")
#   output y1 = x @ w1x + c @ w1c + b1   (f32, padded cols exactly zero)
# --------------------------------------------------------------------------
def _layer1_kernel(*refs, cov, tk, real_k, mask_k):
    if cov > 0:
        x_ref, c_ref, w1x_ref, w1c_ref, b1_ref, y1_ref = refs
    else:
        x_ref, w1x_ref, b1_ref, y1_ref = refs
        c_ref = w1c_ref = None

    k = pl.program_id(1)

    # Output block index is constant across the K axis -> it is resident in
    # VMEM and doubles as the f32 accumulator (no separate scratch needed).
    @pl.when(k == 0)
    def _init():
        y1_ref[...] = jnp.zeros_like(y1_ref)

    xt = x_ref[...]
    if xt.dtype != jnp.bfloat16:
        xt = xt.astype(jnp.bfloat16)
    if mask_k:
        # Ragged last K tile: x is fed un-padded, so columns >= real_k in the
        # tile are garbage from the partial DMA.  Zero-padded weight rows do
        # NOT neutralize garbage (0 * NaN = NaN) -> mask the x tile.
        col = k * tk + lax.broadcasted_iota(jnp.int32, xt.shape, 1)
        xt = jnp.where(col < real_k, xt, jnp.zeros_like(xt))

    y1_ref[...] += jnp.dot(xt, w1x_ref[...], preferred_element_type=jnp.float32)

    @pl.when(k == pl.num_programs(1) - 1)
    def _finish():
        y = y1_ref[...] + b1_ref[...]
        if cov > 0:
            if cov <= 8:
                # Tiny-K covariate term on the VPU (broadcast outer product)
                # instead of a degenerate K<8 MXU matmul.
                cvals = c_ref[...].astype(jnp.float32)
                wc = w1c_ref[...].astype(jnp.float32)
                for j in range(cov):
                    y = y + cvals[:, j:j + 1] * wc[j:j + 1, :]
            else:
                ct = c_ref[...]
                if ct.dtype != jnp.bfloat16:
                    ct = ct.astype(jnp.bfloat16)
                y = y + jnp.dot(ct, w1c_ref[...],
                                preferred_element_type=jnp.float32)
        y1_ref[...] = y


# --------------------------------------------------------------------------
# Kernel 2: epilogue — BN/LN/LeakyReLU, layer 2, fused [mu | logvar] head,
# sigma, reparameterization.  Single grid step; packed lane-dense output.
# --------------------------------------------------------------------------
def _epilogue_kernel(y1_ref, w2_ref, b2_ref, wh_ref, bh_ref, eps_ref, out_ref,
                     *, h1, h2, lp, var_eps):
    a1 = _norm_act(y1_ref[...], h1)

    y2 = (jnp.dot(a1.astype(jnp.bfloat16), w2_ref[...],
                  preferred_element_type=jnp.float32) + b2_ref[...])
    a2 = _norm_act(y2, h2)

    # Fused [mu | log-var] head: one matmul, split in-register.
    heads = (jnp.dot(a2.astype(jnp.bfloat16), wh_ref[...],
                     preferred_element_type=jnp.float32) + bh_ref[...])
    mu = heads[:, :lp]
    logv = heads[:, lp:]
    if var_eps == 0.0:
        sigma = jnp.exp(0.5 * logv)              # == sqrt(exp(logv))
    else:
        sigma = jnp.sqrt(jnp.exp(logv) + var_eps)

    z = mu + sigma * eps_ref[...]                # reparameterization trick

    # Packed, lane-dense output slab: [mu | sigma | z], 128-aligned slices.
    out_ref[:, 0 * lp:1 * lp] = mu
    out_ref[:, 1 * lp:2 * lp] = sigma
    out_ref[:, 2 * lp:3 * lp] = z


def init_params(key, feature_dim, cov, hidden_dim, latent_dim, var_eps=0.0):
    """nn.Linear-style init (uniform +/- 1/sqrt(fan_in)) at the logical
    shapes, then TPU packing: split w1 into x/c parts, fuse mu/sigma heads,
    zero-pad to lane multiples, cast weights to bf16 (biases stay f32)."""
    assert len(hidden_dim) == 2, "kernel is specialized to two hidden layers"
    # TODO(synk): generalize to arbitrary FCNN depth (loop over layers).
    h1_dim, h2_dim = hidden_dim
    in_dim = feature_dim + cov
    keys = jax.random.split(key, 8)

    def linear(kw, kb, fin, fout):
        bound = 1.0 / float(fin) ** 0.5
        w = jax.random.uniform(kw, (fin, fout), jnp.float32, -bound, bound)
        b = jax.random.uniform(kb, (fout,), jnp.float32, -bound, bound)
        return w, b

    w1, b1 = linear(keys[0], keys[1], in_dim, h1_dim)
    w2, b2 = linear(keys[2], keys[3], h1_dim, h2_dim)
    wmu, bmu = linear(keys[4], keys[5], h2_dim, latent_dim)
    ws, bs = linear(keys[6], keys[7], h2_dim, latent_dim)

    # Padded physical dims (generation-aware K tile for the big matmul).
    h1p = _round_up(h1_dim, LANE)
    h2p = _round_up(h2_dim, LANE)
    lp = _round_up(latent_dim, LANE)
    kp128 = _round_up(feature_dim, LANE)
    max_tk = 512 if _vmem_capacity_bytes() <= 64 * 1024 * 1024 else 1024
    tk = min(max_tk, kp128)
    kp = _round_up(feature_dim, tk)

    def pad_w(a, rows, cols):
        out = jnp.zeros((rows, cols), jnp.bfloat16)
        return out.at[:a.shape[0], :a.shape[1]].set(a.astype(jnp.bfloat16))

    def pad_b(b, cols):
        out = jnp.zeros((1, cols), jnp.float32)
        return out.at[0, :b.shape[0]].set(b)

    w1x = pad_w(w1[:feature_dim, :], kp, h1p)
    w1c = pad_w(w1[feature_dim:, :], cov, h1p) if cov > 0 else None
    b1p = pad_b(b1, h1p)
    w2p = pad_w(w2, h1p, h2p)
    b2p = pad_b(b2, h2p)

    wh = jnp.zeros((h2p, 2 * lp), jnp.bfloat16)
    wh = wh.at[:h2_dim, :latent_dim].set(wmu.astype(jnp.bfloat16))
    wh = wh.at[:h2_dim, lp:lp + latent_dim].set(ws.astype(jnp.bfloat16))
    bh = jnp.zeros((1, 2 * lp), jnp.float32)
    bh = bh.at[0, :latent_dim].set(bmu)
    bh = bh.at[0, lp:lp + latent_dim].set(bs)

    return {
        "w1x": w1x, "w1c": w1c, "b1": b1p,
        "w2": w2p, "b2": b2p,
        "wh": wh, "bh": bh,
        "dims": (feature_dim, cov, h1_dim, h2_dim, latent_dim),
        "tk": int(tk),
        "var_eps": float(var_eps),
    }


def rna_encoder_forward(x, c, params, noise):
    """x: (B, feature_dim)  (bf16 preferred), c: (B, cov) or None,
    noise: (B, latent) ~ N(0,1).  Returns (mu, sigma, z), each (B, latent) f32."""
    feature_dim, cov, h1, h2, latent = params["dims"]
    var_eps = params["var_eps"]
    w1x, w1c, b1 = params["w1x"], params["w1c"], params["b1"]
    w2, b2, wh, bh = params["w2"], params["b2"], params["wh"], params["bh"]

    B = x.shape[0]
    kp, h1p = w1x.shape
    h2p = w2.shape[1]
    lp = wh.shape[1] // 2

    vmem_limit = _vmem_limit_bytes()

    # Megacore (v7x): split the layer-1 output columns into a parallel grid
    # axis only when compute-bound (large batch); otherwise keep one N tile so
    # the x stream is read exactly once (HBM-bound regime).
    nn = 2 if (B >= 256 and h1p % 256 == 0) else 1
    tn = h1p // nn

    # Budget-driven K tile (v7x has 64 MiB/TC vs 128 MiB on v5e/v6e).
    tk = int(params["tk"])
    itemsize = jnp.dtype(x.dtype).itemsize

    def _need(tk_):
        need = (2 * B * tk_ * itemsize           # x tiles, double-buffered
                + 2 * tk_ * tn * 2               # w1x tiles (bf16), double-buffered
                + 2 * B * tn * 4                 # resident f32 y1 output block
                + 2 * tn * 4)                    # b1
        if cov > 0:
            need += 2 * (B * cov * itemsize + cov * tn * 2)
        return need

    while (_need(tk) > int(0.7 * vmem_limit) and tk % 256 == 0
           and kp % (tk // 2) == 0 and (kp - tk // 2) < feature_dim):
        tk //= 2
    nk = kp // tk
    mask_k = (feature_dim % tk) != 0

    # ---------------- call 1: layer-1 linear ----------------
    layer1 = functools.partial(_layer1_kernel, cov=cov, tk=tk,
                               real_k=feature_dim, mask_k=mask_k)
    in_specs = [pl.BlockSpec((B, tk), lambda n, k: (0, k))]      # x (K-tiled, raw)
    args = [x]
    if cov > 0:
        in_specs.append(pl.BlockSpec((B, cov), lambda n, k: (0, 0)))   # c
        args.append(c)
    in_specs.append(pl.BlockSpec((tk, tn), lambda n, k: (k, n)))       # w1x
    args.append(w1x)
    if cov > 0:
        in_specs.append(pl.BlockSpec((cov, tn), lambda n, k: (0, n)))  # w1c
        args.append(w1c)
    in_specs.append(pl.BlockSpec((1, tn), lambda n, k: (0, n)))        # b1
    args.append(b1)

    y1 = pl.pallas_call(
        layer1,
        out_shape=jax.ShapeDtypeStruct((B, h1p), jnp.float32),
        grid_spec=pltpu.PrefetchScalarGridSpec(
            num_scalar_prefetch=0,
            grid=(nn, nk),
            in_specs=in_specs,
            out_specs=pl.BlockSpec((B, tn), lambda n, k: (0, n)),
        ),
        compiler_params=pltpu.CompilerParams(
            dimension_semantics=("parallel", "arbitrary"),
            vmem_limit_bytes=vmem_limit),
    )(*args)

    # ---------------- call 2: epilogue ----------------
    eps_p = noise if latent == lp else jnp.pad(noise, ((0, 0), (0, lp - latent)))
    epilogue = functools.partial(_epilogue_kernel, h1=h1, h2=h2, lp=lp,
                                 var_eps=var_eps)
    out = pl.pallas_call(
        epilogue,
        out_shape=jax.ShapeDtypeStruct((B, 3 * lp), jnp.float32),
        grid_spec=pltpu.PrefetchScalarGridSpec(
            num_scalar_prefetch=0,
            grid=(1,),
            in_specs=[
                pl.BlockSpec((B, h1p), lambda i: (0, 0)),        # y1
                pl.BlockSpec((h1p, h2p), lambda i: (0, 0)),      # w2
                pl.BlockSpec((1, h2p), lambda i: (0, 0)),        # b2
                pl.BlockSpec((h2p, 2 * lp), lambda i: (0, 0)),   # fused head W
                pl.BlockSpec((1, 2 * lp), lambda i: (0, 0)),     # fused head b
                pl.BlockSpec((B, lp), lambda i: (0, 0)),         # eps noise
            ],
            out_specs=pl.BlockSpec((B, 3 * lp), lambda i: (0, 0)),
        ),
        compiler_params=pltpu.CompilerParams(
            dimension_semantics=("arbitrary",),
            vmem_limit_bytes=vmem_limit),
    )(y1, w2, b2, wh, bh, eps_p)

    mu = out[:, 0:latent]
    sigma = out[:, lp:lp + latent]
    z = out[:, 2 * lp:2 * lp + latent]
    return mu, sigma, z


if __name__ == "__main__":
    # Small, module-consistent shapes.
    B = 8
    feature_dim = 32
    cov = 4
    hidden_dim = [64, 32]
    latent_dim = 16
    var_eps = 0.0

    key = jax.random.PRNGKey(0)
    kx, kc, kp_, kn = jax.random.split(key, 4)

    # bf16 inputs (halves the HBM stream of x; matmuls accumulate in f32).
    x = jax.random.normal(kx, (B, feature_dim), jnp.float32).astype(jnp.bfloat16)
    c = jax.random.normal(kc, (B, cov), jnp.float32).astype(jnp.bfloat16)
    params = init_params(kp_, feature_dim, cov, hidden_dim, latent_dim,
                         var_eps=var_eps)
    # eps ~ N(0,1) for the reparameterization trick (rsample).
    noise = jax.random.normal(kn, (B, latent_dim), dtype=jnp.float32)

    mu, sigma, z = rna_encoder_forward(x, c, params, noise)
    jax.block_until_ready((mu, sigma, z))

    assert mu.shape == (B, latent_dim)
    assert sigma.shape == (B, latent_dim)
    assert z.shape == (B, latent_dim)
    assert bool(jnp.all(jnp.isfinite(mu)))
    assert bool(jnp.all(jnp.isfinite(sigma)))
    assert bool(jnp.all(sigma > 0))
    assert bool(jnp.all(jnp.isfinite(z)))

    print("KERNEL_OK")
</pallas_src>

<mosaic_0001>
module attributes {stable_mosaic.version = 11 : i64} {
  func.func @_layer1_kernel(%arg0: i32, %arg1: i32, %arg2: memref<8x128xbf16, #tpu.memory_space<vmem>>, %arg3: memref<8x4xbf16, #tpu.memory_space<vmem>>, %arg4: memref<128x128xbf16, #tpu.memory_space<vmem>>, %arg5: memref<4x128xbf16, #tpu.memory_space<vmem>>, %arg6: memref<1x128xf32, #tpu.memory_space<vmem>>, %arg7: memref<8x128xf32, #tpu.memory_space<vmem>>) attributes {dimension_semantics = [#tpu.dimension_semantics<parallel>, #tpu.dimension_semantics<arbitrary>], iteration_bounds = array<i64: 1, 1>, scalar_prefetch = 0 : i64, scratch_operands = 0 : i64, tpu.core_type = #tpu.core_type<tc>, window_params = [{transform_indices = @transform_0, window_bounds = array<i64: 8, 128>}, {pipeline_mode = #tpu.pipeline_mode<synchronous>, transform_indices = @transform_1, window_bounds = array<i64: 8, 4>}, {transform_indices = @transform_2, window_bounds = array<i64: 128, 128>}, {transform_indices = @transform_3, window_bounds = array<i64: 4, 128>}, {transform_indices = @transform_4, window_bounds = array<i64: 1, 128>}, {transform_indices = @transform_5, window_bounds = array<i64: 8, 128>}]} {
    %c0_i32 = arith.constant 0 : i32
    %0 = arith.cmpi eq, %arg1, %c0_i32 : i32
    %1 = arith.extui %0 : i1 to i32
    %c0_i32_0 = arith.constant 0 : i32
    %2 = arith.cmpi ne, %1, %c0_i32_0 : i32
    scf.if %2 {
      %cst_11 = arith.constant 0.000000e+00 : f32
      %20 = vector.broadcast %cst_11 : f32 to vector<8x128xf32>
      %c0_12 = arith.constant 0 : index
      %c0_13 = arith.constant 0 : index
      %21 = vector.load %arg7[%c0_12, %c0_13] : memref<8x128xf32, #tpu.memory_space<vmem>>, vector<8x128xf32>
      tpu.vector_store %arg7[%c0_12, %c0_13], %20 {strides = array<i32>} : memref<8x128xf32, #tpu.memory_space<vmem>>, vector<8x128xf32>,
    } else {
    }
    %c0 = arith.constant 0 : index
    %c0_1 = arith.constant 0 : index
    %3 = vector.load %arg2[%c0, %c0_1] : memref<8x128xbf16, #tpu.memory_space<vmem>>, vector<8x128xbf16>
    %c128_i32 = arith.constant 128 : i32
    %4 = arith.muli %arg1, %c128_i32 : i32
    %5 = tpu.iota {dimensions = array<i32: 1>} : vector<8x128xi32>
    %6 = vector.broadcast %4 : i32 to vector<8x128xi32>
    %7 = arith.addi %6, %5 : vector<8x128xi32>
    %c32_i32 = arith.constant 32 : i32
    %8 = vector.broadcast %c32_i32 : i32 to vector<8x128xi32>
    %9 = arith.cmpi slt, %7, %8 : vector<8x128xi32>
    %cst = arith.constant 0.000000e+00 : bf16
    %10 = vector.broadcast %cst : bf16 to vector<8x128xbf16>
    %11 = arith.select %9, %3, %10 : vector<8x128xi1>, vector<8x128xbf16>
    %c0_2 = arith.constant 0 : index
    %c0_3 = arith.constant 0 : index
    %12 = vector.load %arg7[%c0_2, %c0_3] : memref<8x128xf32, #tpu.memory_space<vmem>>, vector<8x128xf32>
    %c0_4 = arith.constant 0 : index
    %c0_5 = arith.constant 0 : index
    %13 = vector.load %arg4[%c0_4, %c0_5] : memref<128x128xbf16, #tpu.memory_space<vmem>>, vector<128x128xbf16>
    %cst_6 = arith.constant dense<0.000000e+00> : vector<8x128xf32>
    %14 = tpu.matmul %11, %13, %cst_6 {dimension_numbers = #tpu.dot_dimension_numbers<[1], [0], [0], [1], [0, 0, 1, 1], [], []>} : vector<8x128xbf16>, vector<128x128xbf16>, vector<8x128xf32> -> vector<8x128xf32>
    %15 = arith.addf %12, %14 : vector<8x128xf32>
    %c0_7 = arith.constant 0 : index
    %c0_8 = arith.constant 0 : index
    %16 = vector.load %arg7[%c0_7, %c0_8] : memref<8x128xf32, #tpu.memory_space<vmem>>, vector<8x128xf32>
    tpu.vector_store %arg7[%c0_7, %c0_8], %15 {strides = array<i32>} : memref<8x128xf32, #tpu.memory_space<vmem>>, vector<8x128xf32>,
    %c0_i32_9 = arith.constant 0 : i32
    %17 = arith.cmpi eq, %arg1, %c0_i32_9 : i32
    %18 = arith.extui %17 : i1 to i32
    %c0_i32_10 = arith.constant 0 : i32
    %19 = arith.cmpi ne, %18, %c0_i32_10 : i32
    scf.if %19 {
      %c0_11 = arith.constant 0 : index
      %c0_12 = arith.constant 0 : index
      %20 = vector.load %arg7[%c0_11, %c0_12] : memref<8x128xf32, #tpu.memory_space<vmem>>, vector<8x128xf32>
      %c0_13 = arith.constant 0 : index
      %c0_14 = arith.constant 0 : index
      %21 = vector.load %arg6[%c0_13, %c0_14] : memref<1x128xf32, #tpu.memory_space<vmem>>, vector<1x128xf32>
      %22 = vector.broadcast %21 : vector<1x128xf32> to vector<8x128xf32>
      %23 = arith.addf %20, %22 : vector<8x128xf32>
      %c0_15 = arith.constant 0 : index
      %c0_16 = arith.constant 0 : index
      %24 = vector.load %arg3[%c0_15, %c0_16] : memref<8x4xbf16, #tpu.memory_space<vmem>>, vector<8x4xbf16>
      %25 = arith.extf %24 : vector<8x4xbf16> to vector<8x4xf32>
      %c0_17 = arith.constant 0 : index
      %c0_18 = arith.constant 0 : index
      %26 = vector.load %arg5[%c0_17, %c0_18] : memref<4x128xbf16, #tpu.memory_space<vmem>>, vector<4x128xbf16>
      %27 = arith.extf %26 : vector<4x128xbf16> to vector<4x128xf32>
      %28 = vector.extract_strided_slice %25 {offsets = [0, 0], sizes = [8, 1], strides = [1, 1]} : vector<8x4xf32> to vector<8x1xf32>
      %29 = vector.extract_strided_slice %27 {offsets = [0, 0], sizes = [1, 128], strides = [1, 1]} : vector<4x128xf32> to vector<1x128xf32>
      %30 = vector.broadcast %28 : vector<8x1xf32> to vector<8x128xf32>
      %31 = vector.broadcast %29 : vector<1x128xf32> to vector<8x128xf32>
      %32 = arith.mulf %30, %31 : vector<8x128xf32>
      %33 = arith.addf %23, %32 : vector<8x128xf32>
      %34 = vector.extract_strided_slice %25 {offsets = [0, 1], sizes = [8, 1], strides = [1, 1]} : vector<8x4xf32> to vector<8x1xf32>
      %35 = vector.extract_strided_slice %27 {offsets = [1, 0], sizes = [1, 128], strides = [1, 1]} : vector<4x128xf32> to vector<1x128xf32>
      %36 = vector.broadcast %34 : vector<8x1xf32> to vector<8x128xf32>
      %37 = vector.broadcast %35 : vector<1x128xf32> to vector<8x128xf32>
      %38 = arith.mulf %36, %37 : vector<8x128xf32>
      %39 = arith.addf %33, %38 : vector<8x128xf32>
      %40 = vector.extract_strided_slice %25 {offsets = [0, 2], sizes = [8, 1], strides = [1, 1]} : vector<8x4xf32> to vector<8x1xf32>
      %41 = vector.extract_strided_slice %27 {offsets = [2, 0], sizes = [1, 128], strides = [1, 1]} : vector<4x128xf32> to vector<1x128xf32>
      %42 = vector.broadcast %40 : vector<8x1xf32> to vector<8x128xf32>
      %43 = vector.broadcast %41 : vector<1x128xf32> to vector<8x128xf32>
      %44 = arith.mulf %42, %43 : vector<8x128xf32>
      %45 = arith.addf %39, %44 : vector<8x128xf32>
      %46 = vector.extract_strided_slice %25 {offsets = [0, 3], sizes = [8, 1], strides = [1, 1]} : vector<8x4xf32> to vector<8x1xf32>
      %47 = vector.extract_strided_slice %27 {offsets = [3, 0], sizes = [1, 128], strides = [1, 1]} : vector<4x128xf32> to vector<1x128xf32>
      %48 = vector.broadcast %46 : vector<8x1xf32> to vector<8x128xf32>
      %49 = vector.broadcast %47 : vector<1x128xf32> to vector<8x128xf32>
      %50 = arith.mulf %48, %49 : vector<8x128xf32>
      %51 = arith.addf %45, %50 : vector<8x128xf32>
      %c0_19 = arith.constant 0 : index
      %c0_20 = arith.constant 0 : index
      %52 = vector.load %arg7[%c0_19, %c0_20] : memref<8x128xf32, #tpu.memory_space<vmem>>, vector<8x128xf32>
      tpu.vector_store %arg7[%c0_19, %c0_20], %51 {strides = array<i32>} : memref<8x128xf32, #tpu.memory_space<vmem>>, vector<8x128xf32>,
    } else {
    }
    return
  }
  func.func @transform_0(%arg0: i32, %arg1: i32) -> (i32, i32) {
    %c0_i32 = arith.constant 0 : i32
    %c0_i32_0 = arith.constant 0 : i32
    return %c0_i32, %arg1 : i32, i32
  }
  func.func @transform_1(%arg0: i32, %arg1: i32) -> (i32, i32) {
    %c0_i32 = arith.constant 0 : i32
    %c0_i32_0 = arith.constant 0 : i32
    %c0_i32_1 = arith.constant 0 : i32
    return %c0_i32, %c0_i32_0 : i32, i32
  }
  func.func @transform_2(%arg0: i32, %arg1: i32) -> (i32, i32) {
    %c0_i32 = arith.constant 0 : i32
    return %arg1, %arg0 : i32, i32
  }
  func.func @transform_3(%arg0: i32, %arg1: i32) -> (i32, i32) {
    %c0_i32 = arith.constant 0 : i32
    %c0_i32_0 = arith.constant 0 : i32
    return %c0_i32, %arg0 : i32, i32
  }
  func.func @transform_4(%arg0: i32, %arg1: i32) -> (i32, i32) {
    %c0_i32 = arith.constant 0 : i32
    %c0_i32_0 = arith.constant 0 : i32
    return %c0_i32, %arg0 : i32, i32
  }
  func.func @transform_5(%arg0: i32, %arg1: i32) -> (i32, i32) {
    %c0_i32 = arith.constant 0 : i32
    %c0_i32_0 = arith.constant 0 : i32
    return %c0_i32, %arg0 : i32, i32
  }
}

</mosaic_0001>

<llo_original>
// kernel: tpu_custom_call.1
$region0: #{tpu_custom_call.1}
  #allocation0 [shape = 'u32[]', space=smem, size = 0x4, offset = 0x4, fixed_abs, tag = 'smem constant byte address 0x4 - core index']
  #allocation1 [shape = 'u32[144,128]{1,0:T(1,128)}', space=vmem, size = 0x12000, scoped, tag = 'internal scratch']
  %s0 = inlined_call_operand.hbm [shape: bf16[8,32], index: 0, kind: input, shape index: {}]
  %s1 = inlined_call_operand.hbm [shape: bf16[8,4], index: 1, kind: input, shape index: {}]
  %s2 = inlined_call_operand.hbm [shape: bf16[128,128], index: 2, kind: input, shape index: {}]
  %s3 = inlined_call_operand.hbm [shape: bf16[4,128], index: 3, kind: input, shape index: {}]
  %s4 = inlined_call_operand.hbm [shape: f32[1,128], index: 4, kind: input, shape index: {}]
  %s5 = inlined_call_operand.hbm [shape: f32[8,128], index: 5, kind: output, shape index: {}]
  %s6 = sld [smem:[#allocation0]]
  $region58: #{tpu_custom_call.1} parent=0
    _
  %s8 = ssub.s32 1, %s6
  %s9 = scalar_select 0, %s8, %s6
  $region1: #{tpu_custom_call.1} parent=0
    #allocation2 [shape = 'u8[2048]{0}', space=vmem, size = 0x800, scoped, tag = 'input window, operand 0, single buffered']
    #allocation3 [shape = 's32[1]{0}', space=sflag, size = 0x4, scoped, tag = 'scoped memory for tpu_custom_call.1']
    #allocation4 [shape = 's32[1]{0}', space=sflag, size = 0x4, scoped, tag = 'scoped memory for tpu_custom_call.1']
    #allocation5 [shape = 'u8[2048]{0}', space=vmem, size = 0x800, scoped, tag = 'input window, operand 1, single buffered']
    #allocation6 [shape = 's32[1]{0}', space=sflag, size = 0x4, scoped, tag = 'scoped memory for tpu_custom_call.1']
    #allocation7 [shape = 'u8[32768]{0}', space=vmem, size = 0x8000, scoped, tag = 'input window, operand 2, single buffered']
    #allocation8 [shape = 'u8[1024]{0}', space=vmem, size = 0x400, scoped, tag = 'input window, operand 3, single buffered']
    #allocation9 [shape = 's32[1]{0}', space=sflag, size = 0x4, scoped, tag = 'scoped memory for tpu_custom_call.1']
    #allocation10 [shape = 'u8[512]{0}', space=vmem, size = 0x400, scoped, tag = 'input window, operand 4, single buffered']
    #allocation11 [shape = 'u8[4096]{0}', space=vmem, size = 0x1000, scoped, tag = 'output window, operand 0, single buffered']
    %10 = vsyncpa [#allocation3], 0
    %11 = vsyncpa [#allocation6], 0
    %12 = vsyncpa [#allocation9], 0
    %13 = vsyncpa [#allocation4], 0
    // Predicated region
    $region2: #{tpu_custom_call.1} parent=1 // pred_check
      _
    $region3: #{tpu_custom_call.1} parent=1 // pred_check_branch
      %15 = sbr.rel (0) target = $region5
    $region4: #{tpu_custom_call.1} parent=1 // pred_region
      %s17 = ssub.s32 64, 64
      %18 = vsyncadd [#allocation3], %s17
      %s20 = sshll.u32 [#allocation2], 4
      %s21 = int_to_ptr.vmem [resolvable:$true] %s20
      %23 = dma.hbm_to_vmem [thread:$0]  %s0, 64, %s21, [#allocation3]
    $region5: #{tpu_custom_call.1} parent=1 // pred_fallthru
      _
    // Predicated region
    $region6: #{tpu_custom_call.1} parent=1 // pred_check
      _
    $region7: #{tpu_custom_call.1} parent=1 // pred_check_branch
      %25 = sbr.rel (0) target = $region9
    $region8: #{tpu_custom_call.1} parent=1 // pred_region
      %s27 = ssub.s32 64, 64
      %28 = vsyncadd [#allocation6], %s27
      %s30 = sshll.u32 [#allocation5], 4
      %s31 = int_to_ptr.vmem [resolvable:$true] %s30
      %33 = dma.hbm_to_vmem [thread:$0]  %s1, 64, %s31, [#allocation6]
    $region9: #{tpu_custom_call.1} parent=1 // pred_fallthru
      _
    // Predicated region
    $region10: #{tpu_custom_call.1} parent=1 // pred_check
      _
    $region11: #{tpu_custom_call.1} parent=1 // pred_check_branch
      %35 = sbr.rel (0) target = $region13
    $region12: #{tpu_custom_call.1} parent=1 // pred_region
      %s37 = ssub.s32 1024, 1024
      %38 = vsyncadd [#allocation6], %s37
      %s39 = sshll.u32 [#allocation7], 4
      %s40 = int_to_ptr.vmem [resolvable:$true] %s39
      %45 = dma.hbm_to_vmem [thread:$0]  %s2, 1024, %s40, [#allocation6], 64, 64, 4
    $region13: #{tpu_custom_call.1} parent=1 // pred_fallthru
      _
    // Predicated region
    $region14: #{tpu_custom_call.1} parent=1 // pred_check
      _
    $region15: #{tpu_custom_call.1} parent=1 // pred_check_branch
      %47 = sbr.rel (0) target = $region17
    $region16: #{tpu_custom_call.1} parent=1 // pred_region
      %s49 = ssub.s32 32, 32
      %50 = vsyncadd [#allocation9], %s49
      %s52 = sshll.u32 [#allocation8], 4
      %s53 = int_to_ptr.vmem [resolvable:$true] %s52
      %55 = dma.hbm_to_vmem [thread:$0]  %s3, 32, %s53, [#allocation9]
    $region17: #{tpu_custom_call.1} parent=1 // pred_fallthru
      _
    // Predicated region
    $region18: #{tpu_custom_call.1} parent=1 // pred_check
      _
    $region19: #{tpu_custom_call.1} parent=1 // pred_check_branch
      %57 = sbr.rel (0) target = $region21
    $region20: #{tpu_custom_call.1} parent=1 // pred_region
      %s59 = ssub.s32 16, 16
      %60 = vsyncadd [#allocation9], %s59
      %s62 = sshll.u32 [#allocation10], 4
      %s63 = int_to_ptr.vmem [resolvable:$true] %s62
      %65 = dma.hbm_to_vmem [thread:$0]  %s4, 16, %s63, [#allocation9]
    $region21: #{tpu_custom_call.1} parent=1 // pred_fallthru
      _
    // Predicated region
    $region22: #{tpu_custom_call.1} parent=1 // pred_check
      _
    $region23: #{tpu_custom_call.1} parent=1 // pred_check_branch
      %67 = sbr.rel (0) target = $region25
    $region24: #{tpu_custom_call.1} parent=1 // pred_region
      %68 = dma.done [#allocation3], 64
    $region25: #{tpu_custom_call.1} parent=1 // pred_fallthru
      _
    // Predicated region
    $region26: #{tpu_custom_call.1} parent=1 // pred_check
      _
    $region27: #{tpu_custom_call.1} parent=1 // pred_check_branch
      %70 = sbr.rel (0) target = $region29
    $region28: #{tpu_custom_call.1} parent=1 // pred_region
      %71 = dma.done [#allocation6], 64
    $region29: #{tpu_custom_call.1} parent=1 // pred_fallthru
      _
    // Predicated region
    $region30: #{tpu_custom_call.1} parent=1 // pred_check
      _
    $region31: #{tpu_custom_call.1} parent=1 // pred_check_branch
      %73 = sbr.rel (0) target = $region33
    $region32: #{tpu_custom_call.1} parent=1 // pred_region
      %74 = dma.done [#allocation6], 1024
    $region33: #{tpu_custom_call.1} parent=1 // pred_fallthru
      _
    // Predicated region
    $region34: #{tpu_custom_call.1} parent=1 // pred_check
      _
    $region35: #{tpu_custom_call.1} parent=1 // pred_check_branch
      %76 = sbr.rel (0) target = $region37
    $region36: #{tpu_custom_call.1} parent=1 // pred_region
      %77 = dma.done [#allocation9], 32
    $region37: #{tpu_custom_call.1} parent=1 // pred_fallthru
      _
    // Predicated region
    $region38: #{tpu_custom_call.1} parent=1 // pred_check
      _
    $region39: #{tpu_custom_call.1} parent=1 // pred_check_branch
      %79 = sbr.rel (0) target = $region41
    $region40: #{tpu_custom_call.1} parent=1 // pred_region
      %80 = dma.done [#allocation9], 16
    $region41: #{tpu_custom_call.1} parent=1 // pred_fallthru
      _
    %p82 = scmp.eq.s32.totalorder 0, 0
    // Predicated region
    $region42: #{tpu_custom_call.1} parent=1 // pred_check
      %p83 = pneg %p82
    $region43: #{tpu_custom_call.1} parent=1 // pred_check_branch
      %85 = sbr.rel (%p83) target = $region45
    $region44: #{tpu_custom_call.1} parent=1 // pred_region
      %86 = vst [vmem:[#allocation11] sm:$0xff] 0.0
    $region45: #{tpu_custom_call.1} parent=1 // pred_fallthru
      _
    %v87 = vld [vmem:[#allocation2] sm:$0xf]
    %s88 = smul.u32 0, 128
    %v89 = vlaneseq
    %v90 = vand.u32 %v89, 127
    %v91 = vstv %s88
    %v92 = vadd.s32 %v91, %v90
    %vm93 = vcmp.lt.s32.totalorder %v92, 32
    %vm94 = vmpackc.low %vm93, %vm93
    %v95 = vsel %vm94, %v87, 0
    %v96 = vld [vmem:[#allocation11] sm:$0xff]
    %v97 = vld [vmem:[#allocation7] sm:$0xf]
    %v98 = vld [vmem:[#allocation7 + $0x4] sm:$0xf]
    %v99 = vld [vmem:[#allocation7 + $0x8] sm:$0xf]
    %v100 = vld [vmem:[#allocation7 + $0xc] sm:$0xf]
    %v101 = vld [vmem:[#allocation7 + $0x10] sm:$0xf]
    %v102 = vld [vmem:[#allocation7 + $0x14] sm:$0xf]
    %v103 = vld [vmem:[#allocation7 + $0x18] sm:$0xf]
    %v104 = vld [vmem:[#allocation7 + $0x1c] sm:$0xf]
    %v105 = vld [vmem:[#allocation7 + $0x20] sm:$0xf]
    %v106 = vld [vmem:[#allocation7 + $0x24] sm:$0xf]
    %v107 = vld [vmem:[#allocation7 + $0x28] sm:$0xf]
    %v108 = vld [vmem:[#allocation7 + $0x2c] sm:$0xf]
    %v109 = vld [vmem:[#allocation7 + $0x30] sm:$0xf]
    %v110 = vld [vmem:[#allocation7 + $0x34] sm:$0xf]
    %v111 = vld [vmem:[#allocation7 + $0x38] sm:$0xf]
    %v112 = vld [vmem:[#allocation7 + $0x3c] sm:$0xf]
    %v129 = vunpack.c.l.b16 %v97
    %v130 = vunpack.c.l.b16 %v98
    %v131 = vunpack.c.l.b16 %v99
    %v132 = vunpack.c.l.b16 %v100
    %v133 = vunpack.c.l.b16 %v101
    %v134 = vunpack.c.l.b16 %v102
    %v135 = vunpack.c.l.b16 %v103
    %v136 = vunpack.c.l.b16 %v104
    %v137 = vunpack.c.l.b16 %v105
    %v138 = vunpack.c.l.b16 %v106
    %v139 = vunpack.c.l.b16 %v107
    %v140 = vunpack.c.l.b16 %v108
    %v141 = vunpack.c.l.b16 %v109
    %v142 = vunpack.c.l.b16 %v110
    %v143 = vunpack.c.l.b16 %v111
    %v144 = vunpack.c.l.b16 %v112
    %v145 = vpack.c.b16 %v130, %v129
    %v146 = vpack.c.b16 %v132, %v131
    %v147 = vpack.c.b16 %v134, %v133
    %v148 = vpack.c.b16 %v136, %v135
    %v149 = vpack.c.b16 %v138, %v137
    %v150 = vpack.c.b16 %v140, %v139
    %v151 = vpack.c.b16 %v142, %v141
    %v152 = vpack.c.b16 %v144, %v143
    %161 = vmatprep.subr.bf16.mxu0 0
    %162 = vmatpush1.bf16.msra.mxu0 %v145
    %163 = vmatprep.subr.bf16.mxu0 0
    %164 = vmatpush1.bf16.msra.mxu0 %v146
    %165 = vmatprep.subr.bf16.mxu0 0
    %166 = vmatpush1.bf16.msra.mxu0 %v147
    %167 = vmatprep.subr.bf16.mxu0 0
    %168 = vmatpush1.bf16.msra.mxu0 %v148
    %169 = vmatprep.subr.bf16.mxu0 0
    %170 = vmatpush1.bf16.msra.mxu0 %v149
    %171 = vmatprep.subr.bf16.mxu0 0
    %172 = vmatpush1.bf16.msra.mxu0 %v150
    %173 = vmatprep.subr.bf16.mxu0 0
    %174 = vmatpush1.bf16.msra.mxu0 %v151
    %175 = vmatprep.subr.bf16.mxu0 0
    %176 = vmatpush1.bf16.msra.mxu0 %v152
    %177 = vmatprep.subr.bf16.mxu0 0
    %178 = vmatpush1.bf16.msra.mxu0 0
    %179 = vmatprep.subr.bf16.mxu0 0
    %180 = vmatpush1.bf16.msra.mxu0 0
    %181 = vmatprep.subr.bf16.mxu0 0
    %182 = vmatpush1.bf16.msra.mxu0 0
    %183 = vmatprep.subr.bf16.mxu0 0
    %184 = vmatpush1.bf16.msra.mxu0 0
    %185 = vmatprep.subr.bf16.mxu0 0
    %186 = vmatpush1.bf16.msra.mxu0 0
    %187 = vmatprep.subr.bf16.mxu0 0
    %188 = vmatpush1.bf16.msra.mxu0 0
    %189 = vmatprep.subr.bf16.mxu0 0
    %190 = vmatpush1.bf16.msra.mxu0 0
    %191 = vmatprep.subr.bf16.mxu0 0
    %192 = vmatpush1.bf16.msra.mxu0 0
    %193 = vmatprep.mubr.bf16.mxu0 0
    %194 = vmatmul.mubr.bf16.gmra.mrb[0].mxu0 %v95
    %v195 = vpop.f32.mrb[0].mxu0
    %v196 = vadd.f32 0.0, %v195
    %v197 = vpop.f32.mrb[0].mxu0
    %v198 = vpop.f32.mrb[0].mxu0
    %v199 = vpop.f32.mrb[0].mxu0
    %200 = vdwg.mxu0
    %v201 = vadd.f32 %v96, %v196
    %202 = vst [vmem:[#allocation11] sm:$0xff] %v201
    // Predicated region
    $region46: #{tpu_custom_call.1} parent=1 // pred_check
      %p203 = pneg %p82
    $region47: #{tpu_custom_call.1} parent=1 // pred_check_branch
      %205 = sbr.rel (%p203) target = $region49
    $region48: #{tpu_custom_call.1} parent=1 // pred_region
      %v206 = vld [vmem:[#allocation11] sm:$0xff]
      %v207 = vld [vmem:[#allocation10] sm:$0x1]
      %v209 = vlaneseq
      %v210 = vshrl.u32 %v209, 7
      %v211 = vsub.s32 0, %v210
      %v212 = vrot.slane %v207, %v211
      %v214 = vadd.f32 %v206, %v212
      %v215 = vld [vmem:[#allocation5] sm:$0xf]
      %v216 = vunpack.c.l.bf16 %v215
      %v217 = vld [vmem:[#allocation8] sm:$0x3]
      %v218 = vunpack.c.l.bf16 %v217
      %220 = vset.pattern.permute.xlu0 0
      %221 = vperm.xlu0 %220, %v216
      %v222 = vpop.permute.xlu0 %221
      %v224 = vlaneseq
      %v225 = vshrl.u32 %v224, 7
      %v226 = vsub.s32 0, %v225
      %v227 = vrot.slane %v218, %v226
      %v228 = vmul.f32 %v222, %v227
      %v229 = vadd.f32 %v214, %v228
      %230 = vset.pattern.permute.xlu0 1
      %231 = vperm.xlu0 %230, %v216
      %v232 = vpop.permute.xlu0 %231
      %v234 = vlaneseq
      %v235 = vshrl.u32 %v234, 7
      %v236 = vsub.s32 1, %v235
      %v237 = vrot.slane %v218, %v236
      %v238 = vmul.f32 %v232, %v237
      %v239 = vadd.f32 %v229, %v238
      %240 = vset.pattern.permute.xlu0 2
      %241 = vperm.xlu0 %240, %v216
      %v242 = vpop.permute.xlu0 %241
      %v244 = vlaneseq
      %v245 = vshrl.u32 %v244, 7
      %v246 = vsub.s32 2, %v245
      %v247 = vrot.slane %v218, %v246
      %v248 = vmul.f32 %v242, %v247
      %v249 = vadd.f32 %v239, %v248
      %250 = vset.pattern.permute.xlu0 3
      %251 = vperm.xlu0 %250, %v216
      %v252 = vpop.permute.xlu0 %251
      %v254 = vlaneseq
      %v255 = vshrl.u32 %v254, 7
      %v256 = vsub.s32 3, %v255
      %v257 = vrot.slane %v218, %v256
      %v258 = vmul.f32 %v252, %v257
      %v259 = vadd.f32 %v249, %v258
      %260 = vst [vmem:[#allocation11] sm:$0xff] %v259
    $region49: #{tpu_custom_call.1} parent=1 // pred_fallthru
      _
    // Predicated region
    $region50: #{tpu_custom_call.1} parent=1 // pred_check
      _
    $region51: #{tpu_custom_call.1} parent=1 // pred_check_branch
      %262 = sbr.rel (0) target = $region53
    $region52: #{tpu_custom_call.1} parent=1 // pred_region
      %s264 = ssub.s32 128, 128
      %265 = vsyncadd [#allocation4], %s264
      %s267 = sshll.u32 [#allocation11], 4
      %s268 = int_to_ptr.vmem [resolvable:$true] %s267
      %270 = dma.vmem_to_hbm [thread:$0]  %s268, 128, %s5, [#allocation4]
    $region53: #{tpu_custom_call.1} parent=1 // pred_fallthru
      _
    // Predicated region
    $region54: #{tpu_custom_call.1} parent=1 // pred_check
      _
    $region55: #{tpu_custom_call.1} parent=1 // pred_check_branch
      %272 = sbr.rel (0) target = $region57
    $region56: #{tpu_custom_call.1} parent=1 // pred_region
      %273 = dma.done [#allocation4], 128
    $region57: #{tpu_custom_call.1} parent=1 // pred_fallthru
      _
    %274 = vsyncpa [#allocation3], 1
    %275 = vsyncpa [#allocation6], 1
    %276 = vsyncpa [#allocation9], 1
    %277 = vsyncpa [#allocation4], 1

</llo_original>
